<compile_context>
chip_gen: v6e
topology: v6e:2x2x1
jax: 0.10.0
libtpu: 0.0.40
codegen_flags: <defaults>
</compile_context>

<pallas_src>
import functools

import jax
import jax.numpy as jnp
from jax.experimental import pallas as pl
from jax.experimental.pallas import tpu as pltpu


# ----------------------------------------------------------------------------
# helpers
# ----------------------------------------------------------------------------
def _pick_row_tile(n, target):
    """Largest multiple-of-8 divisor of n that is <= target (else n itself)."""
    if n <= target:
        return n
    best = None
    t = 8
    while t <= target:
        if n % t == 0:
            best = t
        t += 8
    return best if best is not None else n


def _tpu_vmem_capacity():
    try:
        cap = int(pltpu.get_tpu_info().vmem_capacity_bytes)
        if cap > 0:
            return cap
    except Exception:
        pass
    return 64 * 1024 * 1024


def _vmem_limit_bytes():
    # Raise the scoped-VMEM cap toward physical, leaving double-buffer
    # headroom: ~48 MiB on v7x (64 MiB phys), ~96 MiB on v5e/v6e (128 MiB).
    cap = _tpu_vmem_capacity()
    return max(32 * 1024 * 1024, min((cap * 3) // 4, 100 * 1024 * 1024))


def _default_row_tile():
    # Smaller query-row tiles on v7x (64 MiB VMEM), larger on v5e/v6e.
    return 256 if _tpu_vmem_capacity() <= 64 * 1024 * 1024 else 512


# ----------------------------------------------------------------------------
# Pallas kernels
# ----------------------------------------------------------------------------
def _proj_kernel(x_ref, w_ref, b_ref, o_ref):
    o_ref[...] = (
        jnp.dot(x_ref[...], w_ref[...], preferred_element_type=jnp.float32)
        + b_ref[...]
    ).astype(o_ref.dtype)


def fused_linear_pallas(x, w, b, row_target=2048):
    """Row-tiled (M, K) @ (K, O) + b with the small weight/bias kept resident."""
    M, K = x.shape
    O = w.shape[1]
    tm = _pick_row_tile(M, row_target)
    return pl.pallas_call(
        _proj_kernel,
        grid=(M // tm,),
        in_specs=[
            pl.BlockSpec((tm, K), lambda i: (i, 0)),
            pl.BlockSpec((K, O), lambda i: (0, 0)),
            pl.BlockSpec((1, O), lambda i: (0, 0)),
        ],
        out_specs=pl.BlockSpec((tm, O), lambda i: (i, 0)),
        out_shape=jax.ShapeDtypeStruct((M, O), jnp.float32),
        compiler_params=pltpu.CompilerParams(
            dimension_semantics=("parallel",),
            vmem_limit_bytes=_vmem_limit_bytes(),
        ),
    )(x, w, b.reshape(1, O))


def _geo_aggregate_kernel(xyzq_ref, xyzt_ref, slab_nb_ref, slab_q_ref,
                          w2_ref, aff1_ref, aff2_ref, o_ref,
                          *, radius, decay_radius, mid, out_ch):
    r2 = radius * radius
    dr2 = decay_radius * decay_radius
    inv_span = 1.0 / (dr2 - r2)

    xyzq = xyzq_ref[0]          # (TM, 3)  query points of this row tile
    xyzt = xyzt_ref[0]          # (3, N)   all points (transposed)

    # pairwise per-component diff: d_c[i, j] = xyz[j, c] - xyz_q[i, c]
    d0 = xyzt[0:1, :] - xyzq[:, 0:1]
    d1 = xyzt[1:2, :] - xyzq[:, 1:2]
    d2 = xyzt[2:3, :] - xyzq[:, 2:2 + 1]
    sqd = d0 * d0 + d1 * d1 + d2 * d2                       # (TM, N)

    # distance-decay weight; neighbours past decay_radius clamp to 0 -> same
    # result as the reference's sort-and-truncate-to-S (sort-free form).
    w = jnp.maximum(1.0 - (sqd - r2) * inv_span, 0.0)
    w = w * pl.reciprocal(jnp.sum(w, axis=-1, keepdims=True), approx=True)

    # sqrt/divide-free: (max(axis.d,0)/|d|)^2 == cr^2 / sqd (self pair -> 0).
    wos = w * pl.reciprocal(sqd + 1e-12, approx=True)        # (TM, N)

    slab_nb = slab_nb_ref[0]                                 # (N, out+6*mid)
    slab_q = slab_q_ref[0]                                   # (TM, out+6*mid)
    center = slab_q[:, :out_ch]                              # (TM, out)

    tm = xyzq.shape[0]
    acc = jnp.zeros((tm, mid), dtype=jnp.float32)
    # axis order identical to the reference: +z, -z, +y, -y, +x, -x
    for a, (dc, s) in enumerate(
        [(d2, 1.0), (d2, -1.0), (d1, 1.0), (d1, -1.0), (d0, 1.0), (d0, -1.0)]
    ):
        cr = jnp.maximum(s * dc, 0.0)
        cos2 = (cr * cr) * wos                                # (TM, N)
        dirs = slab_nb[:, out_ch + a * mid: out_ch + (a + 1) * mid]  # (N, mid)
        acc = acc + jnp.dot(cos2, dirs, preferred_element_type=jnp.float32)

    # fused per-point tail: BN1 affine + ReLU -> direction_mlp2 -> + center
    # -> BN2 affine (mlp2 bias folded into the shift) -> ReLU
    h = jnp.maximum(acc * aff1_ref[0:1, :] + aff1_ref[1:2, :], 0.0)     # (TM, mid)
    d2h = jnp.dot(h, w2_ref[...], preferred_element_type=jnp.float32)   # (TM, out)
    o_ref[0] = jnp.maximum((center + d2h) * aff2_ref[0:1, :] + aff2_ref[1:2, :], 0.0)


def geo_aggregate_pallas(xyz, xyzt, slab, w2, aff1, aff2,
                         radius, decay_radius, mid, out_ch, row_tile=None):
    B, N, _ = xyz.shape
    ctot = slab.shape[-1]
    if row_tile is None:
        row_tile = _default_row_tile()
    tm = _pick_row_tile(N, row_tile)
    kernel = functools.partial(
        _geo_aggregate_kernel, radius=float(radius),
        decay_radius=float(decay_radius), mid=mid, out_ch=out_ch)
    return pl.pallas_call(
        kernel,
        grid=(B, N // tm),
        in_specs=[
            pl.BlockSpec((1, tm, 3), lambda b, r: (b, r, 0)),      # query coords
            pl.BlockSpec((1, 3, N), lambda b, r: (b, 0, 0)),       # all coords^T
            pl.BlockSpec((1, N, ctot), lambda b, r: (b, 0, 0)),    # neighbour slab
            pl.BlockSpec((1, tm, ctot), lambda b, r: (b, r, 0)),   # query slab (center)
            pl.BlockSpec((mid, out_ch), lambda b, r: (0, 0)),      # W2 (resident)
            pl.BlockSpec((2, mid), lambda b, r: (0, 0)),           # BN1 scale/shift
            pl.BlockSpec((2, out_ch), lambda b, r: (0, 0)),        # BN2 scale/shift
        ],
        out_specs=pl.BlockSpec((1, tm, out_ch), lambda b, r: (b, r, 0)),
        out_shape=jax.ShapeDtypeStruct((B, N, out_ch), jnp.float32),
        compiler_params=pltpu.CompilerParams(
            dimension_semantics=("parallel", "parallel"),
            vmem_limit_bytes=_vmem_limit_bytes(),
        ),
    )(xyz, xyzt, slab, slab, w2, aff1, aff2)


def _sqdist_kernel(x1_ref, x2t_ref, o_ref):
    x1 = x1_ref[0]              # (TS, C)
    x2t = x2t_ref[0]            # (C, M)
    s1 = jnp.sum(x1 * x1, axis=-1, keepdims=True)
    s2 = jnp.sum(x2t * x2t, axis=0, keepdims=True)
    d = s1 + s2 - 2.0 * jnp.dot(x1, x2t, preferred_element_type=jnp.float32)
    o_ref[0] = jnp.maximum(d, 0.0)   # clamp cancellation negatives


def square_distance_pallas(src, dst, row_target=1024):
    """dist[b, n, m] = ||src[b, n] - dst[b, m]||^2, clamped at 0."""
    B, N, C = src.shape
    M = dst.shape[1]
    dstt = jnp.transpose(dst, (0, 2, 1))
    ts = _pick_row_tile(N, row_target)
    return pl.pallas_call(
        _sqdist_kernel,
        grid=(B, N // ts),
        in_specs=[
            pl.BlockSpec((1, ts, C), lambda b, r: (b, r, 0)),
            pl.BlockSpec((1, C, M), lambda b, r: (b, 0, 0)),
        ],
        out_specs=pl.BlockSpec((1, ts, M), lambda b, r: (b, r, 0)),
        out_shape=jax.ShapeDtypeStruct((B, N, M), jnp.float32),
        compiler_params=pltpu.CompilerParams(
            dimension_semantics=("parallel", "parallel")),
    )(src, dstt)


# ----------------------------------------------------------------------------
# sampling / grouping (data-dependent -> plain JAX)
# ----------------------------------------------------------------------------
def index_points(points, idx):
    """points: (B, N, C); idx: (B, ...) int  ->  (B, ..., C)."""
    return jax.vmap(lambda p, i: p[i])(points, idx)


def farthest_point_sample(xyz, npoint, key):
    # TODO(synk): FPS is a sequential data-dependent argmax loop — no clean
    # Pallas equivalent; plain JAX lax.fori_loop.  torch uses a random initial
    # index; a fixed PRNG key is used here for determinism.
    B, N, _ = xyz.shape
    farthest0 = jax.random.randint(key, (B,), 0, N, dtype=jnp.int32)

    def body(i, state):
        centroids, distance, farthest = state
        centroids = centroids.at[:, i].set(farthest)
        centroid = index_points(xyz, farthest[:, None])          # (B, 1, 3)
        dist = jnp.sum((xyz - centroid) ** 2, axis=-1)           # (B, N)
        distance = jnp.minimum(distance, dist)
        farthest = jnp.argmax(distance, axis=-1).astype(jnp.int32)
        return centroids, distance, farthest

    init = (jnp.zeros((B, npoint), jnp.int32),
            jnp.full((B, N), 1e10, jnp.float32), farthest0)
    centroids, _, _ = jax.lax.fori_loop(0, npoint, body, init)
    return centroids


def query_ball_point(radius, nsample, xyz, new_xyz):
    # TODO(synk): sort + data-dependent gather stay in plain JAX; only the
    # dense pairwise square distance runs as a Pallas kernel.
    B, N, _ = xyz.shape
    S = new_xyz.shape[1]
    sqrdists = square_distance_pallas(new_xyz, xyz)              # (B, S, N)
    group_idx = jnp.broadcast_to(
        jnp.arange(N, dtype=jnp.int32)[None, None, :], (B, S, N))
    group_idx = jnp.where(sqrdists > radius ** 2, N, group_idx)
    group_idx = jnp.sort(group_idx, axis=-1)[:, :, :nsample]
    group_first = group_idx[:, :, 0:1]
    group_idx = jnp.where(group_idx == N,
                          jnp.broadcast_to(group_first, group_idx.shape),
                          group_idx)
    return group_idx


def sample_and_group(npoint, radius, nsample, xyz, points, key):
    fps_idx = farthest_point_sample(xyz, npoint, key)            # (B, npoint)
    new_xyz = index_points(xyz, fps_idx)                         # (B, npoint, 3)
    idx = query_ball_point(radius, nsample, xyz, new_xyz)        # (B, npoint, nsample)
    new_points = index_points(points, idx)                       # (B, npoint, nsample, D)
    return new_xyz, new_points


def sample_and_group_all(xyz, points):
    B = xyz.shape[0]
    return jnp.zeros((B, 1, 3), jnp.float32), points[:, None, :, :]


# ----------------------------------------------------------------------------
# GeoConv / PointNetSetAbstraction forward
# ----------------------------------------------------------------------------
def init_geoconv_params(key, in_ch, out_ch, mid_ch):
    ks = jax.random.split(key, 6)
    sc = 0.1
    f32 = jnp.float32
    Wc = jax.random.normal(ks[0], (in_ch, out_ch), f32) * sc
    bc = jax.random.normal(ks[1], (out_ch,), f32) * sc
    # Direction weights stored AXIS-MAJOR (6 contiguous blocks of `mid_ch`
    # columns) — equivalent to the torch (mid*6) layout under a fixed column
    # permutation — so the aggregate kernel slices lane blocks directly.
    Wd = jax.random.normal(ks[2], (in_ch, 6 * mid_ch), f32) * sc
    bd = jax.random.normal(ks[3], (6 * mid_ch,), f32) * sc
    W2 = jax.random.normal(ks[4], (mid_ch, out_ch), f32) * sc
    b2 = jax.random.normal(ks[5], (out_ch,), f32) * sc
    return dict(
        Wf=jnp.concatenate([Wc, Wd], axis=1),      # fused [center | direction]
        bf=jnp.concatenate([bc, bd], axis=0),
        W2=W2, b2=b2,
        # inference-mode BatchNorm1d params (PyTorch defaults)
        g1=jnp.ones((mid_ch,), f32), b1=jnp.zeros((mid_ch,), f32),
        rm1=jnp.zeros((mid_ch,), f32), rv1=jnp.ones((mid_ch,), f32),
        g2=jnp.ones((out_ch,), f32), b2n=jnp.zeros((out_ch,), f32),
        rm2=jnp.zeros((out_ch,), f32), rv2=jnp.ones((out_ch,), f32),
    )


def geoconv_forward(params, xyz, xyzt, points, radius, decay_radius, row_tile=None):
    B, N, Cin = points.shape
    mid, out_ch = params["W2"].shape
    eps = 1e-5

    # single fused projection: [center | direction(axis-major)] slab
    flat = points.reshape(B * N, Cin)
    slab = fused_linear_pallas(flat, params["Wf"], params["bf"])
    slab = slab.reshape(B, N, out_ch + 6 * mid)

    # folded inference-BatchNorm affines (direction_mlp2 bias folded into BN2 shift)
    s1 = params["g1"] / jnp.sqrt(params["rv1"] + eps)
    t1 = params["b1"] - params["rm1"] * s1
    s2 = params["g2"] / jnp.sqrt(params["rv2"] + eps)
    t2 = params["b2n"] - params["rm2"] * s2
    aff1 = jnp.stack([s1, t1], axis=0)                         # (2, mid)
    aff2 = jnp.stack([s2, params["b2"] * s2 + t2], axis=0)     # (2, out)

    return geo_aggregate_pallas(xyz, xyzt, slab, params["W2"], aff1, aff2,
                                radius, decay_radius, mid, out_ch, row_tile)


def set_abstraction_forward(params_list, xyz, points, radius, npoint, nsample,
                            group_all, fps_key, row_tile=None):
    """PointNetSetAbstraction.forward: GeoConv stack -> grouping -> max-pool."""
    xyzt = jnp.transpose(xyz, (0, 2, 1))       # (B, 3, N), shared by all layers
    for p in params_list:
        points = geoconv_forward(p, xyz, xyzt, points, radius, 2.0 * radius,
                                 row_tile=row_tile)
    if group_all:
        new_xyz, grouped = sample_and_group_all(xyz, points)
    else:
        new_xyz, grouped = sample_and_group(npoint, radius, nsample, xyz,
                                            points, fps_key)
    new_points = jnp.max(grouped, axis=2)
    return new_xyz, new_points


# ----------------------------------------------------------------------------
# Pure-JAX reference (same math, HIGHEST precision) for sanity checking
# ----------------------------------------------------------------------------
_HI = jax.lax.Precision.HIGHEST


def _ref_geoconv(params, xyz, points, radius, decay):
    B, N, Cin = points.shape
    mid, out_ch = params["W2"].shape
    eps = 1e-5
    flat = points.reshape(B * N, Cin)
    slab = jnp.dot(flat, params["Wf"], precision=_HI) + params["bf"]
    center = slab[:, :out_ch]
    dirf = slab[:, out_ch:].reshape(B, N, 6, mid)            # axis-major

    diff = xyz[:, None, :, :] - xyz[:, :, None, :]           # diff[b,i,j]=xyz[j]-xyz[i]
    sqd = jnp.sum(diff ** 2, -1)
    norm = jnp.sqrt(sqd)
    r2, dr2 = radius ** 2, decay ** 2
    w = jnp.maximum(1.0 - (sqd - r2) / (dr2 - r2), 0.0)
    w = w / jnp.sum(w, -1, keepdims=True)
    axis_mat = jnp.array([[0, 0, 1.0], [0, 0, -1], [0, 1, 0],
                          [0, -1, 0], [1, 0, 0], [-1, 0, 0]], jnp.float32)
    cos = jnp.maximum(jnp.einsum("bijc,ac->bija", diff, axis_mat, precision=_HI), 0.0)
    cos = (cos / (norm[..., None] + 1e-8)) ** 2 * w[..., None]
    agg = jnp.einsum("bija,bjad->bid", cos, dirf, precision=_HI)

    s1 = params["g1"] / jnp.sqrt(params["rv1"] + eps)
    t1 = params["b1"] - params["rm1"] * s1
    h = jnp.maximum(agg.reshape(B * N, mid) * s1 + t1, 0.0)
    d2 = jnp.dot(h, params["W2"], precision=_HI) + params["b2"]
    s2 = params["g2"] / jnp.sqrt(params["rv2"] + eps)
    t2 = params["b2n"] - params["rm2"] * s2
    return jnp.maximum((center + d2) * s2 + t2, 0.0).reshape(B, N, out_ch)


def _ref_forward(params_list, xyz, points, radius, npoint, nsample, group_all, fps_key):
    pts = points
    for p in params_list:
        pts = _ref_geoconv(p, xyz, pts, radius, 2.0 * radius)
    if group_all:
        new_xyz, grouped = sample_and_group_all(xyz, pts)
    else:
        new_xyz, grouped = sample_and_group(npoint, radius, nsample, xyz,
                                            pts, fps_key)
    return new_xyz, jnp.max(grouped, axis=2)


# ----------------------------------------------------------------------------
if __name__ == "__main__":
    key = jax.random.PRNGKey(0)
    B, N = 2, 16
    D_in = 8
    out_chnls = (16, 16)
    mid_chnls = (8, 8)
    radius = 0.5
    npoint, nsample = 8, 8
    group_all = False

    k_xyz, k_pts, k_par, k_fps = jax.random.split(key, 4)
    xyz = jax.random.uniform(k_xyz, (B, N, 3), jnp.float32)
    points = jax.random.normal(k_pts, (B, N, D_in), jnp.float32)

    params_list = []
    last = D_in
    pk = k_par
    for oc, mc in zip(out_chnls, mid_chnls):
        pk, sub = jax.random.split(pk)
        params_list.append(init_geoconv_params(sub, last, oc, mc))
        last = oc

    # row_tile=8 so the (batch, row-tile) aggregate grid is actually exercised
    # at this toy size; leave None in production (generation-aware default).
    new_xyz, new_points = set_abstraction_forward(
        params_list, xyz, points, radius, npoint, nsample, group_all, k_fps,
        row_tile=8)
    new_xyz, new_points = jax.block_until_ready((new_xyz, new_points))

    assert new_xyz.shape == (B, npoint, 3), new_xyz.shape
    assert new_points.shape == (B, npoint, out_chnls[-1]), new_points.shape
    assert bool(jnp.all(jnp.isfinite(new_points)))

    ref_xyz, ref_points = jax.block_until_ready(
        _ref_forward(params_list, xyz, points, radius, npoint, nsample,
                     group_all, k_fps))
    assert float(jnp.max(jnp.abs(new_xyz - ref_xyz))) == 0.0
    err = float(jnp.max(jnp.abs(new_points - ref_points)))
    assert err < 5e-2, f"mismatch vs jnp reference: {err}"

    print("KERNEL_OK")
</pallas_src>

<mosaic_0001>
module attributes {stable_mosaic.version = 11 : i64} {
  func.func @_proj_kernel(%arg0: i32, %arg1: memref<32x8xf32, #tpu.memory_space<vmem>>, %arg2: memref<8x64xf32, #tpu.memory_space<vmem>>, %arg3: memref<1x64xf32, #tpu.memory_space<vmem>>, %arg4: memref<32x64xf32, #tpu.memory_space<vmem>>) attributes {dimension_semantics = [#tpu.dimension_semantics<parallel>], iteration_bounds = array<i64: 1>, scalar_prefetch = 0 : i64, scratch_operands = 0 : i64, tpu.core_type = #tpu.core_type<tc>, window_params = [{transform_indices = @transform_0, window_bounds = array<i64: 32, 8>}, {pipeline_mode = #tpu.pipeline_mode<synchronous>, transform_indices = @transform_1, window_bounds = array<i64: 8, 64>}, {pipeline_mode = #tpu.pipeline_mode<synchronous>, transform_indices = @transform_2, window_bounds = array<i64: 1, 64>}, {transform_indices = @transform_3, window_bounds = array<i64: 32, 64>}]} {
    %c0 = arith.constant 0 : index
    %c0_0 = arith.constant 0 : index
    %0 = vector.load %arg1[%c0, %c0_0] : memref<32x8xf32, #tpu.memory_space<vmem>>, vector<32x8xf32>
    %c0_1 = arith.constant 0 : index
    %c0_2 = arith.constant 0 : index
    %1 = vector.load %arg2[%c0_1, %c0_2] : memref<8x64xf32, #tpu.memory_space<vmem>>, vector<8x64xf32>
    %cst = arith.constant dense<0.000000e+00> : vector<32x64xf32>
    %2 = tpu.matmul %0, %1, %cst {dimension_numbers = #tpu.dot_dimension_numbers<[1], [0], [0], [1], [0, 0, 1, 1], [], []>} : vector<32x8xf32>, vector<8x64xf32>, vector<32x64xf32> -> vector<32x64xf32>
    %c0_3 = arith.constant 0 : index
    %c0_4 = arith.constant 0 : index
    %3 = vector.load %arg3[%c0_3, %c0_4] : memref<1x64xf32, #tpu.memory_space<vmem>>, vector<1x64xf32>
    %4 = vector.broadcast %3 : vector<1x64xf32> to vector<32x64xf32>
    %5 = arith.addf %2, %4 : vector<32x64xf32>
    %c0_5 = arith.constant 0 : index
    %c0_6 = arith.constant 0 : index
    %6 = vector.load %arg4[%c0_5, %c0_6] : memref<32x64xf32, #tpu.memory_space<vmem>>, vector<32x64xf32>
    tpu.vector_store %arg4[%c0_5, %c0_6], %5 {strides = array<i32>} : memref<32x64xf32, #tpu.memory_space<vmem>>, vector<32x64xf32>,
    return
  }
  func.func @transform_0(%arg0: i32) -> (i32, i32) {
    %c0_i32 = arith.constant 0 : i32
    %c0_i32_0 = arith.constant 0 : i32
    return %arg0, %c0_i32 : i32, i32
  }
  func.func @transform_1(%arg0: i32) -> (i32, i32) {
    %c0_i32 = arith.constant 0 : i32
    %c0_i32_0 = arith.constant 0 : i32
    %c0_i32_1 = arith.constant 0 : i32
    return %c0_i32, %c0_i32_0 : i32, i32
  }
  func.func @transform_2(%arg0: i32) -> (i32, i32) {
    %c0_i32 = arith.constant 0 : i32
    %c0_i32_0 = arith.constant 0 : i32
    %c0_i32_1 = arith.constant 0 : i32
    return %c0_i32, %c0_i32_0 : i32, i32
  }
  func.func @transform_3(%arg0: i32) -> (i32, i32) {
    %c0_i32 = arith.constant 0 : i32
    %c0_i32_0 = arith.constant 0 : i32
    return %arg0, %c0_i32 : i32, i32
  }
}

</mosaic_0001>

<llo_original>
// kernel: tpu_custom_call.1
$region0: #{tpu_custom_call.1}
  #allocation0 [shape = 'u32[]', space=smem, size = 0x4, offset = 0x4, fixed_abs, tag = 'smem constant byte address 0x4 - core index']
  #allocation1 [shape = 'u32[144,128]{1,0:T(1,128)}', space=vmem, size = 0x12000, scoped, tag = 'internal scratch']
  %s0 = inlined_call_operand.vmem [shape: f32[32,8], index: 0, kind: input, shape index: {}]
  %s1 = inlined_call_operand.vmem [shape: f32[8,64], index: 1, kind: input, shape index: {}]
  %s2 = inlined_call_operand.vmem [shape: f32[1,64], index: 2, kind: input, shape index: {}]
  %s3 = inlined_call_operand.hbm [shape: f32[32,64], index: 3, kind: output, shape index: {}]
  %s4 = sld [smem:[#allocation0]]
  $region22: #{tpu_custom_call.1} parent=0
    _
  %s6 = ssub.s32 1, %s4
  %s7 = scalar_select 0, %s6, %s4
  $region1: #{tpu_custom_call.1} parent=0
    #allocation2 [shape = 'u8[16384]{0}', space=vmem, size = 0x4000, scoped, tag = 'output window, operand 0, single buffered']
    #allocation3 [shape = 's32[1]{0}', space=sflag, size = 0x4, scoped, tag = 'scoped memory for tpu_custom_call.1']
    %8 = vsyncpa [#allocation3], 0
    // Predicated region
    $region2: #{tpu_custom_call.1} parent=1 // pred_check
      _
    $region3: #{tpu_custom_call.1} parent=1 // pred_check_branch
      %10 = sbr.rel (0) target = $region5
    $region4: #{tpu_custom_call.1} parent=1 // pred_region
      _
    $region5: #{tpu_custom_call.1} parent=1 // pred_fallthru
      _
    // Predicated region
    $region6: #{tpu_custom_call.1} parent=1 // pred_check
      _
    $region7: #{tpu_custom_call.1} parent=1 // pred_check_branch
      %12 = sbr.rel (0) target = $region9
    $region8: #{tpu_custom_call.1} parent=1 // pred_region
      _
    $region9: #{tpu_custom_call.1} parent=1 // pred_fallthru
      _
    // Predicated region
    $region10: #{tpu_custom_call.1} parent=1 // pred_check
      _
    $region11: #{tpu_custom_call.1} parent=1 // pred_check_branch
      %14 = sbr.rel (0) target = $region13
    $region12: #{tpu_custom_call.1} parent=1 // pred_region
      _
    $region13: #{tpu_custom_call.1} parent=1 // pred_fallthru
      _
    %v15 = vld [vmem:[%s0] sm:$0xff]
    %v16 = vld [vmem:[%s0 + $0x8] sm:$0xff]
    %v17 = vld [vmem:[%s0 + $0x10] sm:$0xff]
    %v18 = vld [vmem:[%s0 + $0x18] sm:$0xff]
    %v19 = vld [vmem:[%s1] sm:$0xff]
    %v20 = vld [vmem:[%s2] sm:$0x1]
    %v22 = vlaneseq
    %v23 = vshrl.u32 %v22, 7
    %v24 = vsub.s32 0, %v23
    %v25 = vrot.slane %v20, %v24
    %vm27 = vcmask 64512
    %v29 = vsel %vm27, %v15, 0
    %v32 = vsel %vm27, %v16, 0
    %v35 = vsel %vm27, %v17, 0
    %v38 = vsel %vm27, %v18, 0
    %40 = vmatprep.subr.mxu0 0.0
    %41 = vmatpush1.msra.mxu0 0.0
    %42 = vmatprep.subr.mxu0 0.0
    %43 = vmatpush1.msra.mxu0 0.0
    %44 = vmatprep.subr.mxu0 0.0
    %45 = vmatpush1.msra.mxu0 0.0
    %46 = vmatprep.subr.mxu0 0.0
    %47 = vmatpush1.msra.mxu0 0.0
    %48 = vmatprep.subr.mxu0 0.0
    %49 = vmatpush1.msra.mxu0 0.0
    %50 = vmatprep.subr.mxu0 0.0
    %51 = vmatpush1.msra.mxu0 0.0
    %52 = vmatprep.subr.mxu0 0.0
    %53 = vmatpush1.msra.mxu0 0.0
    %54 = vmatprep.subr.mxu0 0.0
    %55 = vmatpush1.msra.mxu0 0.0
    %56 = vmatprep.subr.mxu0 0.0
    %57 = vmatpush1.msra.mxu0 0.0
    %58 = vmatprep.subr.mxu0 0.0
    %59 = vmatpush1.msra.mxu0 0.0
    %60 = vmatprep.subr.mxu0 0.0
    %61 = vmatpush1.msra.mxu0 0.0
    %62 = vmatprep.subr.mxu0 0.0
    %63 = vmatpush1.msra.mxu0 0.0
    %64 = vmatprep.subr.mxu0 0.0
    %65 = vmatpush1.msra.mxu0 0.0
    %66 = vmatprep.subr.mxu0 0.0
    %67 = vmatpush1.msra.mxu0 0.0
    %68 = vmatprep.subr.mxu0 0.0
    %69 = vmatpush1.msra.mxu0 0.0
    %70 = vmatprep.subr.mxu0 0.0
    %71 = vmatpush1.msra.mxu0 %v19
    %72 = vmatprep.subr.mxu0 0.0
    %73 = vmatpush2.msra.mxu0 0.0
    %74 = vmatprep.subr.mxu0 0.0
    %75 = vmatpush2.msra.mxu0 0.0
    %76 = vmatprep.subr.mxu0 0.0
    %77 = vmatpush2.msra.mxu0 0.0
    %78 = vmatprep.subr.mxu0 0.0
    %79 = vmatpush2.msra.mxu0 0.0
    %80 = vmatprep.subr.mxu0 0.0
    %81 = vmatpush2.msra.mxu0 0.0
    %82 = vmatprep.subr.mxu0 0.0
    %83 = vmatpush2.msra.mxu0 0.0
    %84 = vmatprep.subr.mxu0 0.0
    %85 = vmatpush2.msra.mxu0 0.0
    %86 = vmatprep.subr.mxu0 0.0
    %87 = vmatpush2.msra.mxu0 0.0
    %88 = vmatprep.subr.mxu0 0.0
    %89 = vmatpush2.msra.mxu0 0.0
    %90 = vmatprep.subr.mxu0 0.0
    %91 = vmatpush2.msra.mxu0 0.0
    %92 = vmatprep.subr.mxu0 0.0
    %93 = vmatpush2.msra.mxu0 0.0
    %94 = vmatprep.subr.mxu0 0.0
    %95 = vmatpush2.msra.mxu0 0.0
    %96 = vmatprep.subr.mxu0 0.0
    %97 = vmatpush2.msra.mxu0 0.0
    %98 = vmatprep.subr.mxu0 0.0
    %99 = vmatpush2.msra.mxu0 0.0
    %100 = vmatprep.subr.mxu0 0.0
    %101 = vmatpush2.msra.mxu0 0.0
    %102 = vmatprep.subr.mxu0 0.0
    %103 = vmatpush2.msra.mxu0 0.0
    %104 = vmatprep.mubr.f32.mxu0 0.0
    %105 = vmatmul.mubr.f32.gmra.mxu0 %v29
    %v106 = vpop.f32.mrf.mxu0
    %v107 = vadd.f32 %v25, %v106
    %v108 = vpop.f32.mrf.mxu0
    %109 = vmatprep.mubr.f32.mxu0 0.0
    %110 = vmatmul.mubr.f32.gmra.mxu0 %v32
    %v111 = vpop.f32.mrf.mxu0
    %v112 = vadd.f32 %v25, %v111
    %v113 = vpop.f32.mrf.mxu0
    %114 = vmatprep.mubr.f32.mxu0 0.0
    %115 = vmatmul.mubr.f32.gmra.mxu0 %v35
    %v116 = vpop.f32.mrf.mxu0
    %v117 = vadd.f32 %v25, %v116
    %v118 = vpop.f32.mrf.mxu0
    %119 = vmatprep.mubr.f32.mxu0 0.0
    %120 = vmatmul.mubr.f32.gmra.mxu0 %v38
    %v121 = vpop.f32.mrf.mxu0
    %v122 = vadd.f32 %v25, %v121
    %v123 = vpop.f32.mrf.mxu0
    %124 = vdwg.mxu0
    %vm125 = vcmask 523264
    %126 = vst.msk [vmem:[#allocation2] sm:$0xff] %vm125, %v107
    %127 = vst.msk [vmem:[#allocation2 + $0x8] sm:$0xff] %vm125, %v112
    %128 = vst.msk [vmem:[#allocation2 + $0x10] sm:$0xff] %vm125, %v117
    %129 = vst.msk [vmem:[#allocation2 + $0x18] sm:$0xff] %vm125, %v122
    // Predicated region
    $region14: #{tpu_custom_call.1} parent=1 // pred_check
      _
    $region15: #{tpu_custom_call.1} parent=1 // pred_check_branch
      %131 = sbr.rel (0) target = $region17
    $region16: #{tpu_custom_call.1} parent=1 // pred_region
      %s133 = ssub.s32 512, 512
      %134 = vsyncadd [#allocation3], %s133
      %s135 = sshll.u32 [#allocation2], 4
      %s136 = int_to_ptr.vmem [resolvable:$true] %s135
      %141 = dma.vmem_to_hbm [thread:$0]  %s136, 512, %s3, [#allocation3], 128, 128, 8
    $region17: #{tpu_custom_call.1} parent=1 // pred_fallthru
      _
    // Predicated region
    $region18: #{tpu_custom_call.1} parent=1 // pred_check
      _
    $region19: #{tpu_custom_call.1} parent=1 // pred_check_branch
      %143 = sbr.rel (0) target = $region21
    $region20: #{tpu_custom_call.1} parent=1 // pred_region
      %144 = dma.done [#allocation3], 512
    $region21: #{tpu_custom_call.1} parent=1 // pred_fallthru
      _
    %145 = vsyncpa [#allocation3], 1

</llo_original>
